<compile_context>
chip_gen: v6e
topology: v6e:2x2x1
jax: 0.10.0
libtpu: 0.0.40
codegen_flags: <defaults>
</compile_context>

<pallas_src>
import jax
import jax.numpy as jnp
from jax.experimental import pallas as pl
from jax.experimental.pallas import tpu as pltpu


def _round_up(v, m):
    return ((v + m - 1) // m) * m


def _head_kernel(x_ref, w_ref, b_ref, o_ref):
    # x_ref: (tile_n, d_sub)   w_ref: (d_sub, tile_c)
    # b_ref: (1, tile_c)       o_ref: (tile_n, tile_c)
    acc = jnp.dot(x_ref[...], w_ref[...], preferred_element_type=jnp.float32)
    o_ref[...] = (acc + b_ref[...].astype(jnp.float32)).astype(o_ref.dtype)


def modified_head_forward(x, weight, bias, current_subset_dim, *,
                          max_tile_n=512, return_class_padded=False):
    """Pallas implementation of ModifiedHead.forward.

    x:      (..., current_subset_dim)
    weight: (num_classes, embed_dim)   -- PyTorch F.linear convention
    bias:   (num_classes,)
    current_subset_dim must be a static Python int.

    If return_class_padded=True, the (..., c_pad) result is returned without
    the final class-dim slice (caller ignores the zero tail), saving a full
    re-read/re-write of the output in XLA.
    """
    d_sub = int(current_subset_dim)
    assert x.shape[-1] == d_sub, "last dim of x must equal current_subset_dim"
    num_classes, embed_dim = weight.shape
    assert d_sub <= embed_dim

    lead_shape = x.shape[:-1]
    n = 1
    for s in lead_shape:
        n *= int(s)
    n = max(n, 1)

    out_dtype = x.dtype
    x_bytes = jnp.dtype(x.dtype).itemsize
    w_bytes = jnp.dtype(weight.dtype).itemsize
    b_bytes = jnp.dtype(bias.dtype).itemsize
    o_bytes = jnp.dtype(out_dtype).itemsize

    # ---- One-time wrapper glue on the SMALL tensors only ------------------
    # Lane-dense class dim (unmasked stores); weight pre-transposed once so
    # the kernel never reshuffles the (C, D) PyTorch layout per tile.
    c_pad = _round_up(max(num_classes, 1), 128)
    w_sub_t = weight[:, :d_sub].T                                  # (d_sub, C)
    if c_pad == num_classes:
        w_t = w_sub_t
        b_p = bias.reshape(1, num_classes)
    else:
        w_t = jnp.zeros((d_sub, c_pad), weight.dtype).at[:, :num_classes].set(w_sub_t)
        b_p = jnp.zeros((1, c_pad), bias.dtype).at[0, :num_classes].set(bias)

    # Activations: flatten only -- no N padding, no K padding in HBM.
    x2d = x.reshape(n, d_sub)

    # ---- Tile selection (VMEM-budget aware, conservative across gens) -----
    vmem_budget = 24 * 1024 * 1024
    # C tile: cap the (double-buffered) resident weight block at ~12 MiB so
    # vocab-sized heads still fit v7x VMEM; ViT-sized heads get a single tile.
    max_w_cols = max((12 * 1024 * 1024) // max(2 * d_sub * w_bytes, 1), 128)
    tile_c = min(c_pad, _round_up(min(max_w_cols, c_pad), 128))

    resident = 2 * d_sub * tile_c * w_bytes + 2 * tile_c * b_bytes
    per_row = 2 * (d_sub * x_bytes + tile_c * o_bytes)  # double-buffered x + out rows
    avail = max(vmem_budget - resident, 8 * per_row)
    tile_n = min(max_tile_n, max((avail // per_row) // 8 * 8, 8))
    # Keep >= 2 N-steps when possible so v7x's two TensorCores both get work.
    tile_n = int(max(min(tile_n, max(_round_up(pl.cdiv(n, 2), 8), 8)), 8))

    grid = (pl.cdiv(n, tile_n), pl.cdiv(c_pad, tile_c))

    # Explicit VMEM limit: roomy for the chosen tiles (v5e's 16 MiB scoped
    # default is too tight for large heads) but within v7x's 64 MiB physical.
    need = resident + per_row * tile_n + (1 << 20)
    vmem_limit = int(min(max(2 * need, 32 * 1024 * 1024), 64 * 1024 * 1024))

    # Cost estimate with the TRUE (unpadded) problem sizes.
    cost = pl.CostEstimate(
        flops=2 * n * d_sub * num_classes,
        transcendentals=0,
        bytes_accessed=(n * d_sub * x_bytes
                        + num_classes * d_sub * w_bytes
                        + num_classes * b_bytes
                        + n * num_classes * o_bytes))

    # NOTE: weight/bias keep default double-buffering; pipeline_mode=
    # pl.Buffered(1) would halve their resident footprint but is left off for
    # lowering compatibility -- the VMEM budget above accounts for two buffers.
    out_p = pl.pallas_call(
        _head_kernel,
        out_shape=jax.ShapeDtypeStruct((n, c_pad), out_dtype),
        grid_spec=pl.GridSpec(
            grid=grid,
            in_specs=[
                # x: tiled over N, constant in the (inner) C axis -> stays
                # resident across C tiles.  Partial last N block is masked.
                pl.BlockSpec((tile_n, d_sub), lambda i, j: (i, 0)),
                # weight / bias: constant in N -> fetched once per C tile.
                pl.BlockSpec((d_sub, tile_c), lambda i, j: (0, j)),
                pl.BlockSpec((1, tile_c), lambda i, j: (0, j)),
            ],
            out_specs=pl.BlockSpec((tile_n, tile_c), lambda i, j: (i, j)),
        ),
        compiler_params=pltpu.CompilerParams(
            dimension_semantics=("parallel", "parallel"),
            vmem_limit_bytes=vmem_limit),
        cost_estimate=cost,
    )(x2d, w_t, b_p)

    if return_class_padded or c_pad == num_classes:
        return out_p.reshape(*lead_shape, out_p.shape[-1])
    return out_p[:, :num_classes].reshape(*lead_shape, num_classes)


if __name__ == "__main__":
    # Small, module-consistent shapes.
    embed_dim = 32
    num_classes = 16
    current_subset_dim = 24   # configure_subnetwork(24)
    batch, seq = 2, 8

    key = jax.random.PRNGKey(0)
    kx, kw, kb, kx2 = jax.random.split(key, 4)

    # Deterministic synthetic parameters (module __init__ gives the shapes).
    weight = jax.random.normal(kw, (num_classes, embed_dim), dtype=jnp.float32) * 0.02
    bias = jax.random.normal(kb, (num_classes,), dtype=jnp.float32) * 0.02

    x = jax.random.normal(kx, (batch, seq, current_subset_dim), dtype=jnp.float32)

    out = jax.block_until_ready(
        modified_head_forward(x, weight, bias, current_subset_dim))

    # Reference check in plain JAX (F.linear semantics).
    ref = x @ weight[:, :current_subset_dim].T + bias
    assert out.shape == (batch, seq, num_classes)
    assert jnp.allclose(out, ref, atol=1e-5, rtol=1e-5)

    # Second check: multi-tile N grid with a partial (masked) last block.
    x_big = jax.random.normal(kx2, (3, 400, current_subset_dim), dtype=jnp.float32)
    out_big = jax.block_until_ready(
        modified_head_forward(x_big, weight, bias, current_subset_dim))
    ref_big = x_big @ weight[:, :current_subset_dim].T + bias
    assert out_big.shape == (3, 400, num_classes)
    assert jnp.allclose(out_big, ref_big, atol=1e-5, rtol=1e-5)

    print("KERNEL_OK")
</pallas_src>

<mosaic_0001>
module attributes {stable_mosaic.version = 11 : i64} {
  func.func @_head_kernel(%arg0: i32, %arg1: i32, %arg2: memref<8x24xf32, #tpu.memory_space<vmem>>, %arg3: memref<24x128xf32, #tpu.memory_space<vmem>>, %arg4: memref<1x128xf32, #tpu.memory_space<vmem>>, %arg5: memref<8x128xf32, #tpu.memory_space<vmem>>) attributes {dimension_semantics = [#tpu.dimension_semantics<parallel>, #tpu.dimension_semantics<parallel>], iteration_bounds = array<i64: 2, 1>, scalar_prefetch = 0 : i64, scratch_operands = 0 : i64, tpu.core_type = #tpu.core_type<tc>, window_params = [{transform_indices = @transform_0, window_bounds = array<i64: 8, 24>}, {transform_indices = @transform_1, window_bounds = array<i64: 24, 128>}, {transform_indices = @transform_2, window_bounds = array<i64: 1, 128>}, {transform_indices = @transform_3, window_bounds = array<i64: 8, 128>}]} {
    %c0 = arith.constant 0 : index
    %c0_0 = arith.constant 0 : index
    %0 = vector.load %arg2[%c0, %c0_0] : memref<8x24xf32, #tpu.memory_space<vmem>>, vector<8x24xf32>
    %c0_1 = arith.constant 0 : index
    %c0_2 = arith.constant 0 : index
    %1 = vector.load %arg3[%c0_1, %c0_2] : memref<24x128xf32, #tpu.memory_space<vmem>>, vector<24x128xf32>
    %cst = arith.constant dense<0.000000e+00> : vector<8x128xf32>
    %2 = tpu.matmul %0, %1, %cst {dimension_numbers = #tpu.dot_dimension_numbers<[1], [0], [0], [1], [0, 0, 1, 1], [], []>} : vector<8x24xf32>, vector<24x128xf32>, vector<8x128xf32> -> vector<8x128xf32>
    %c0_3 = arith.constant 0 : index
    %c0_4 = arith.constant 0 : index
    %3 = vector.load %arg4[%c0_3, %c0_4] : memref<1x128xf32, #tpu.memory_space<vmem>>, vector<1x128xf32>
    %4 = vector.broadcast %3 : vector<1x128xf32> to vector<8x128xf32>
    %5 = arith.addf %2, %4 : vector<8x128xf32>
    %c0_5 = arith.constant 0 : index
    %c0_6 = arith.constant 0 : index
    %6 = vector.load %arg5[%c0_5, %c0_6] : memref<8x128xf32, #tpu.memory_space<vmem>>, vector<8x128xf32>
    tpu.vector_store %arg5[%c0_5, %c0_6], %5 {strides = array<i32>} : memref<8x128xf32, #tpu.memory_space<vmem>>, vector<8x128xf32>,
    return
  }
  func.func @transform_0(%arg0: i32, %arg1: i32) -> (i32, i32) {
    %c0_i32 = arith.constant 0 : i32
    %c0_i32_0 = arith.constant 0 : i32
    return %arg0, %c0_i32 : i32, i32
  }
  func.func @transform_1(%arg0: i32, %arg1: i32) -> (i32, i32) {
    %c0_i32 = arith.constant 0 : i32
    %c0_i32_0 = arith.constant 0 : i32
    return %c0_i32, %arg1 : i32, i32
  }
  func.func @transform_2(%arg0: i32, %arg1: i32) -> (i32, i32) {
    %c0_i32 = arith.constant 0 : i32
    %c0_i32_0 = arith.constant 0 : i32
    return %c0_i32, %arg1 : i32, i32
  }
  func.func @transform_3(%arg0: i32, %arg1: i32) -> (i32, i32) {
    %c0_i32 = arith.constant 0 : i32
    return %arg0, %arg1 : i32, i32
  }
}

</mosaic_0001>

<llo_original>
// kernel: tpu_custom_call.1
$region0: #{tpu_custom_call.1}
  #allocation0 [shape = 'u32[]', space=smem, size = 0x4, offset = 0x4, fixed_abs, tag = 'smem constant byte address 0x4 - core index']
  #allocation1 [shape = 'u32[144,128]{1,0:T(1,128)}', space=vmem, size = 0x12000, scoped, tag = 'internal scratch']
  %s0 = inlined_call_operand.hbm [shape: f32[16,24], index: 0, kind: input, shape index: {}]
  %s1 = inlined_call_operand.hbm [shape: f32[24,128], index: 1, kind: input, shape index: {}]
  %s2 = inlined_call_operand.vmem [shape: f32[1,128], index: 2, kind: input, shape index: {}]
  %s3 = inlined_call_operand.hbm [shape: f32[16,128], index: 3, kind: output, shape index: {}]
  %s4 = sld [smem:[#allocation0]]
  $region53: #{tpu_custom_call.1} parent=0
    _
  %s6 = ssub.s32 1, %s4
  %s7 = scalar_select 0, %s6, %s4
  $region1: #{tpu_custom_call.1} parent=0
    #allocation2 [shape = 'u8[8192]{0}', space=vmem, size = 0x2000, scoped, tag = 'input window, operand 0']
    #allocation3 [shape = 's32[2]{0}', space=sflag, size = 0x8, scoped, tag = 'scoped memory for tpu_custom_call.1']
    #allocation4 [shape = 's32[2]{0}', space=sflag, size = 0x8, scoped, tag = 'scoped memory for tpu_custom_call.1']
    #allocation5 [shape = 'u8[12288]{0}', space=vmem, size = 0x3000, scoped, tag = 'input window, operand 1, single buffered']
    #allocation6 [shape = 's32[1]{0}', space=sflag, size = 0x4, scoped, tag = 'scoped memory for tpu_custom_call.1']
    #allocation7 [shape = 'u8[8192]{0}', space=vmem, size = 0x2000, scoped, tag = 'output window, operand 0']
    %8 = vsyncpa [#allocation3], 0
    %s9 = scalar_lea.sflag [#allocation3], 1
    %10 = vsyncpa %s9, 0
    %11 = vsyncpa [#allocation6], 0
    %12 = vsyncpa [#allocation4], 0
    %s13 = scalar_lea.sflag [#allocation4], 1
    %14 = vsyncpa %s13, 0
    loop: start=0, step=1, limit=4
    $region2: #{tpu_custom_call.1} parent=1 // loop_pre_header
      _
    $region3: #{tpu_custom_call.1} parent=1 // loop_header
      %s16 = sphi 0, %s20
      %p17 = scmp.ge.s32.totalorder %s16, 4
      %s23 = sphi 0, %s35
      %s24 = sphi 0, %s31
      %s25 = sphi 0, %s23
      %s26 = sphi 0, %s24
      %s27 = sphi 0, %s25
      %s28 = sphi 0, %s26
      %s38 = sphi 0, %s40
      %s41 = sphi 0, %s38
      %s42 = sphi 0, %s41
      %s58 = sphi 0, %s42
      %s64 = sphi 0, %s66
      %s67 = sphi 0, %s64
      %s68 = sphi 0, %s67
      %s84 = sphi 0, %s68
      %s90 = sphi 0, %s92
      %s93 = sphi 0, %s90
      %s94 = sphi 0, %s93
      %s110 = sphi 0, %s94
      %s118 = sphi 0, %s120
      %s121 = sphi 0, %s118
      %s122 = sphi 0, %s121
      %s138 = sphi 0, %s122
    $region4: #{tpu_custom_call.1} parent=1 // loop_header_branch
      %19 = sbr.rel (%p17) target = $region8
    $region5: #{tpu_custom_call.1} parent=1 // loop_body
      %s21 = ssub.s32 %s16, 1
      %s22 = ssub.s32 %s16, 2
      %s29 = sadd.s32 1, %s24
      %p30 = scmp.ge.s32.totalorder %s29, 1
      %s31 = scalar_select %p30, 0, %s29
      %s32 = sadd.s32 1, %s23
      %s33 = scalar_select %p30, %s32, %s23
      %p34 = scmp.ge.s32.totalorder %s33, 2
      %s35 = scalar_select %p34, 0, %s33
      %s36 = ssub.s32 %s23, %s35
      %p37 = scmp.eq.s32.totalorder %s36, 0
      %s39 = sadd.s32 %s38, 1
      %s40 = scalar_select %p37, %s38, %s39
      %p43 = pneg %p37
      %p44 = scmp.eq.s32.totalorder %s16, 1
      %p45 = por %p43, %p44
      %p46 = scmp.ne.s32.totalorder %s38, %s41
      %p47 = scmp.eq.s32.totalorder %s16, 0
      %p48 = por %p46, %p47
      %p49 = scmp.ne.s32.totalorder %s38, %s41
      %p50 = scmp.eq.s32.totalorder %s21, 1
      %p51 = por %p49, %p50
      %p52 = scmp.ne.s32.totalorder %s41, %s42
      %p53 = scmp.eq.s32.totalorder %s21, 0
      %p54 = por %p52, %p53
      %p55 = scmp.ne.s32.totalorder %s41, %s42
      %p56 = scmp.eq.s32.totalorder %s22, 1
      %p57 = por %p55, %p56
      %p59 = scmp.ne.s32.totalorder %s42, %s58
      %p60 = scmp.eq.s32.totalorder %s22, 0
      %p61 = por %p59, %p60
      %s62 = ssub.s32 %s24, %s31
      %p63 = scmp.eq.s32.totalorder %s62, 0
      %s65 = sadd.s32 %s64, 1
      %s66 = scalar_select %p63, %s64, %s65
      %p69 = pneg %p63
      %p70 = scmp.eq.s32.totalorder %s16, 1
      %p71 = por %p69, %p70
      %p72 = scmp.ne.s32.totalorder %s64, %s67
      %p73 = scmp.eq.s32.totalorder %s16, 0
      %p74 = por %p72, %p73
      %p75 = scmp.ne.s32.totalorder %s64, %s67
      %p76 = scmp.eq.s32.totalorder %s21, 1
      %p77 = por %p75, %p76
      %p78 = scmp.ne.s32.totalorder %s67, %s68
      %p79 = scmp.eq.s32.totalorder %s21, 0
      %p80 = por %p78, %p79
      %p81 = scmp.ne.s32.totalorder %s67, %s68
      %p82 = scmp.eq.s32.totalorder %s22, 1
      %p83 = por %p81, %p82
      %p85 = scmp.ne.s32.totalorder %s68, %s84
      %p86 = scmp.eq.s32.totalorder %s22, 0
      %p87 = por %p85, %p86
      %s88 = ssub.s32 %s24, %s31
      %p89 = scmp.eq.s32.totalorder %s88, 0
      %s91 = sadd.s32 %s90, 1
      %s92 = scalar_select %p89, %s90, %s91
      %p95 = pneg %p89
      %p96 = scmp.eq.s32.totalorder %s16, 1
      %p97 = por %p95, %p96
      %p98 = scmp.ne.s32.totalorder %s90, %s93
      %p99 = scmp.eq.s32.totalorder %s16, 0
      %p100 = por %p98, %p99
      %p101 = scmp.ne.s32.totalorder %s90, %s93
      %p102 = scmp.eq.s32.totalorder %s21, 1
      %p103 = por %p101, %p102
      %p104 = scmp.ne.s32.totalorder %s93, %s94
      %p105 = scmp.eq.s32.totalorder %s21, 0
      %p106 = por %p104, %p105
      %p107 = scmp.ne.s32.totalorder %s93, %s94
      %p108 = scmp.eq.s32.totalorder %s22, 1
      %p109 = por %p107, %p108
      %p111 = scmp.ne.s32.totalorder %s94, %s110
      %p112 = scmp.eq.s32.totalorder %s22, 0
      %p113 = por %p111, %p112
      %s114 = ssub.s32 %s23, %s35
      %s115 = ssub.s32 %s24, %s31
      %s116 = sor.u32 %s114, %s115
      %p117 = scmp.eq.s32.totalorder %s116, 0
      %s119 = sadd.s32 %s118, 1
      %s120 = scalar_select %p117, %s118, %s119
      %p123 = pneg %p117
      %p124 = scmp.eq.s32.totalorder %s16, 1
      %p125 = por %p123, %p124
      %p126 = scmp.ne.s32.totalorder %s118, %s121
      %p127 = scmp.eq.s32.totalorder %s16, 0
      %p128 = por %p126, %p127
      %p129 = scmp.ne.s32.totalorder %s118, %s121
      %p130 = scmp.eq.s32.totalorder %s21, 1
      %p131 = por %p129, %p130
      %p132 = scmp.ne.s32.totalorder %s121, %s122
      %p133 = scmp.eq.s32.totalorder %s21, 0
      %p134 = por %p132, %p133
      %p135 = scmp.ne.s32.totalorder %s121, %s122
      %p136 = scmp.eq.s32.totalorder %s22, 1
      %p137 = por %p135, %p136
      %p139 = scmp.ne.s32.totalorder %s122, %s138
      %p140 = scmp.eq.s32.totalorder %s22, 0
      %p141 = por %p139, %p140
      %p142 = scmp.le.s32.totalorder 1, %s16
      %p143 = scmp.lt.s32.totalorder %s16, 3
      %p144 = pnand %p142, %p143
      %p145 = pneg %p144
      // Predicated region
      $region9: #{tpu_custom_call.1} parent=5 // pred_check
        _
      $region10: #{tpu_custom_call.1} parent=5 // pred_check_branch
        %147 = sbr.rel (%p144) target = $region12
      $region11: #{tpu_custom_call.1} parent=5 // pred_region
        %s148 = ssub.s32 %s16, 1
        // Predicated region
        $region13: #{tpu_custom_call.1} parent=11 // pred_check
          %p149 = pneg %p80
        $region14: #{tpu_custom_call.1} parent=11 // pred_check_branch
          %151 = sbr.rel (%p149) target = $region16
        $region15: #{tpu_custom_call.1} parent=11 // pred_region
          %s153 = ssub.s32 384, 384
          %154 = vsyncadd [#allocation6], %s153
          %s155 = smul.addr %s26, 128
          %s156 = scalar_lea.hbm %s1, %s155
          %s157 = sshll.u32 [#allocation5], 4
          %s158 = int_to_ptr.vmem [resolvable:$true] %s157
          %163 = dma.hbm_to_vmem [thread:$0]  %s156, 384, %s158, [#allocation6], 128, 128, 8
        $region16: #{tpu_custom_call.1} parent=11 // pred_fallthru
          _
        // Predicated region
        $region17: #{tpu_custom_call.1} parent=11 // pred_check
          %p164 = pneg %p106
        $region18: #{tpu_custom_call.1} parent=11 // pred_check_branch
          %166 = sbr.rel (%p164) target = $region20
        $region19: #{tpu_custom_call.1} parent=11 // pred_region
          %p167 = scmp.lt.s32.totalorder %s26, 0
          %s168 = scalar_select %p167, %s26, 0
          %s169 = scalar_lea.vmem %s2, %s168
        $region20: #{tpu_custom_call.1} parent=11 // pred_fallthru
          _
      $region12: #{tpu_custom_call.1} parent=5 // pred_fallthru
        _
      %p170 = scmp.lt.s32.totalorder %s16, 2
      // Predicated region
      $region21: #{tpu_custom_call.1} parent=5 // pred_check
        %p171 = pneg %p170
      $region22: #{tpu_custom_call.1} parent=5 // pred_check_branch
        %173 = sbr.rel (%p171) target = $region24
      $region23: #{tpu_custom_call.1} parent=5 // pred_region
        // Predicated region
        $region25: #{tpu_custom_call.1} parent=23 // pred_check
          %p174 = pneg %p48
        $region26: #{tpu_custom_call.1} parent=23 // pred_check_branch
          %176 = sbr.rel (%p174) target = $region28
        $region27: #{tpu_custom_call.1} parent=23 // pred_region
          %s177 = sand.u32 %s38, 1
          %s178 = scalar_lea.sflag [#allocation3], %s177
          %s179 = sand.u32 %s38, 1
          %s180 = smul.addr %s179, 8
          %s181 = scalar_lea.vmem [#allocation2], %s180
          %s183 = ssub.s32 128, 128
          %184 = vsyncadd %s178, %s183
          %s185 = smul.addr %s23, 128
          %s186 = scalar_lea.hbm %s0, %s185
          %s188 = sshll.u32 %s181, 4
          %s189 = int_to_ptr.vmem [resolvable:$true] %s188
          %191 = dma.hbm_to_vmem [thread:$0]  %s186, 128, %s189, %s178
        $region28: #{tpu_custom_call.1} parent=23 // pred_fallthru
          _
      $region24: #{tpu_custom_call.1} parent=5 // pred_fallthru
        _
      %p192 = scmp.le.s32.totalorder 1, %s16
      %p193 = scmp.lt.s32.totalorder %s16, 3
      %p194 = pnand %p192, %p193
      %p195 = pneg %p194
      // Predicated region
      $region29: #{tpu_custom_call.1} parent=5 // pred_check
        _
      $region30: #{tpu_custom_call.1} parent=5 // pred_check_branch
        %197 = sbr.rel (%p194) target = $region32
      $region31: #{tpu_custom_call.1} parent=5 // pred_region
        %s198 = ssub.s32 %s16, 1
        %s199 = sand.u32 %s41, 1
        %s200 = scalar_lea.sflag [#allocation3], %s199
        %s201 = sand.u32 %s41, 1
        %s202 = smul.addr %s201, 8
        %s203 = scalar_lea.vmem [#allocation2], %s202
        // Predicated region
        $region33: #{tpu_custom_call.1} parent=31 // pred_check
          %p204 = pneg %p54
        $region34: #{tpu_custom_call.1} parent=31 // pred_check_branch
          %206 = sbr.rel (%p204) target = $region36
        $region35: #{tpu_custom_call.1} parent=31 // pred_region
          %207 = dma.done %s200, 128
        $region36: #{tpu_custom_call.1} parent=31 // pred_fallthru
          _
        // Predicated region
        $region37: #{tpu_custom_call.1} parent=31 // pred_check
          %p208 = pneg %p80
        $region38: #{tpu_custom_call.1} parent=31 // pred_check_branch
          %210 = sbr.rel (%p208) target = $region40
        $region39: #{tpu_custom_call.1} parent=31 // pred_region
          %211 = dma.done [#allocation6], 384
        $region40: #{tpu_custom_call.1} parent=31 // pred_fallthru
          _
        %s212 = sand.u32 %s41, 1
        %s213 = scalar_lea.sflag [#allocation3], %s212
        %s214 = sand.u32 %s41, 1
        %s215 = smul.addr %s214, 8
        %s216 = scalar_lea.vmem [#allocation2], %s215
        %p217 = pneg %p54
        %p218 = pneg %p51
        %p219 = pneg %p80
        %p220 = pneg %p77
        %p221 = scmp.lt.s32.totalorder %s26, 0
        %s222 = scalar_select %p221, %s26, 0
        %s223 = scalar_lea.vmem %s2, %s222
        %p224 = pneg %p106
        %p225 = pneg %p103
        %p226 = pneg %p134
        %p227 = pneg %p131
        %s228 = sand.u32 %s121, 1
        %s229 = scalar_lea.sflag [#allocation4], %s228
        %s230 = sand.u32 %s121, 1
        %s231 = smul.addr %s230, 8
        %s232 = scalar_lea.vmem [#allocation7], %s231
        %p233 = scmp.lt.s32.totalorder %s26, 0
        %s234 = scalar_select %p233, %s26, 0
        %s235 = scalar_lea.vmem %s2, %s234
        %v236 = vld [vmem:[%s203] sm:$0xff]
        %v237 = vld [vmem:[#allocation5] sm:$0xff]
        %v238 = vld [vmem:[#allocation5 + $0x8] sm:$0xff]
        %v239 = vld [vmem:[#allocation5 + $0x10] sm:$0xff]
        %v240 = vld [vmem:[%s235] sm:$0x1]
        %v242 = vlaneseq
        %v243 = vshrl.u32 %v242, 7
        %v244 = vsub.s32 0, %v243
        %v245 = vrot.slane %v240, %v244
        %vm247 = vcmask 195584
        %v249 = vsel %vm247, %v236, 0
        %251 = vmatprep.subr.mxu0 0.0
        %252 = vmatpush1.msra.mxu0 0.0
        %253 = vmatprep.subr.mxu0 0.0
        %254 = vmatpush1.msra.mxu0 0.0
        %255 = vmatprep.subr.mxu0 0.0
        %256 = vmatpush1.msra.mxu0 0.0
        %257 = vmatprep.subr.mxu0 0.0
        %258 = vmatpush1.msra.mxu0 0.0
        %259 = vmatprep.subr.mxu0 0.0
        %260 = vmatpush1.msra.mxu0 0.0
        %261 = vmatprep.subr.mxu0 0.0
        %262 = vmatpush1.msra.mxu0 0.0
        %263 = vmatprep.subr.mxu0 0.0
        %264 = vmatpush1.msra.mxu0 0.0
        %265 = vmatprep.subr.mxu0 0.0
        %266 = vmatpush1.msra.mxu0 0.0
        %267 = vmatprep.subr.mxu0 0.0
        %268 = vmatpush1.msra.mxu0 0.0
        %269 = vmatprep.subr.mxu0 0.0
        %270 = vmatpush1.msra.mxu0 0.0
        %271 = vmatprep.subr.mxu0 0.0
        %272 = vmatpush1.msra.mxu0 0.0
        %273 = vmatprep.subr.mxu0 0.0
        %274 = vmatpush1.msra.mxu0 0.0
        %275 = vmatprep.subr.mxu0 0.0
        %276 = vmatpush1.msra.mxu0 0.0
        %277 = vmatprep.subr.mxu0 0.0
        %278 = vmatpush1.msra.mxu0 %v239
        %279 = vmatprep.subr.mxu0 0.0
        %280 = vmatpush1.msra.mxu0 %v238
        %281 = vmatprep.subr.mxu0 0.0
        %282 = vmatpush1.msra.mxu0 %v237
        %283 = vmatprep.subr.mxu0 0.0
        %284 = vmatpush2.msra.mxu0 0.0
        %285 = vmatprep.subr.mxu0 0.0
        %286 = vmatpush2.msra.mxu0 0.0
        %287 = vmatprep.subr.mxu0 0.0
        %288 = vmatpush2.msra.mxu0 0.0
        %289 = vmatprep.subr.mxu0 0.0
        %290 = vmatpush2.msra.mxu0 0.0
        %291 = vmatprep.subr.mxu0 0.0
        %292 = vmatpush2.msra.mxu0 0.0
        %293 = vmatprep.subr.mxu0 0.0
        %294 = vmatpush2.msra.mxu0 0.0
        %295 = vmatprep.subr.mxu0 0.0
        %296 = vmatpush2.msra.mxu0 0.0
        %297 = vmatprep.subr.mxu0 0.0
        %298 = vmatpush2.msra.mxu0 0.0
        %299 = vmatprep.subr.mxu0 0.0
        %300 = vmatpush2.msra.mxu0 0.0
        %301 = vmatprep.subr.mxu0 0.0
        %302 = vmatpush2.msra.mxu0 0.0
        %303 = vmatprep.subr.mxu0 0.0
        %304 = vmatpush2.msra.mxu0 0.0
        %305 = vmatprep.subr.mxu0 0.0
        %306 = vmatpush2.msra.mxu0 0.0
        %307 = vmatprep.subr.mxu0 0.0
        %308 = vmatpush2.msra.mxu0 0.0
        %309 = vmatprep.subr.mxu0 0.0
        %310 = vmatpush2.msra.mxu0 0.0
        %311 = vmatprep.subr.mxu0 0.0
        %312 = vmatpush2.msra.mxu0 0.0
        %313 = vmatprep.subr.mxu0 0.0
        %314 = vmatpush2.msra.mxu0 0.0
        %315 = vmatprep.mubr.f32.mxu0 0.0
        %316 = vmatmul.mubr.f32.gmra.mxu0 %v249
        %v317 = vpop.f32.mrf.mxu0
        %v318 = vadd.f32 %v245, %v317
        %v319 = vpop.f32.mrf.mxu0
        %320 = vdwg.mxu0
        %321 = vst [vmem:[%s232] sm:$0xff] %v318
        %s322 = sand.u32 %s121, 1
        %s323 = scalar_lea.sflag [#allocation4], %s322
        %s324 = sand.u32 %s121, 1
        %s325 = smul.addr %s324, 8
        %s326 = scalar_lea.vmem [#allocation7], %s325
        // Predicated region
        $region41: #{tpu_custom_call.1} parent=31 // pred_check
          %p327 = pneg %p131
        $region42: #{tpu_custom_call.1} parent=31 // pred_check_branch
          %329 = sbr.rel (%p327) target = $region44
        $region43: #{tpu_custom_call.1} parent=31 // pred_region
          %s331 = ssub.s32 128, 128
          %332 = vsyncadd %s323, %s331
          %s333 = sadd.s32 %s26, %s25
          %s334 = smul.addr %s333, 128
          %s335 = scalar_lea.hbm %s3, %s334
          %s337 = sshll.u32 %s326, 4
          %s338 = int_to_ptr.vmem [resolvable:$true] %s337
          %340 = dma.vmem_to_hbm [thread:$0]  %s338, 128, %s335, %s323
        $region44: #{tpu_custom_call.1} parent=31 // pred_fallthru
          _
      $region32: #{tpu_custom_call.1} parent=5 // pred_fallthru
        _
      %p341 = scmp.le.s32.totalorder 2, %s16
      // Predicated region
      $region45: #{tpu_custom_call.1} parent=5 // pred_check
        %p342 = pneg %p341
      $region46: #{tpu_custom_call.1} parent=5 // pred_check_branch
        %344 = sbr.rel (%p342) target = $region48
      $region47: #{tpu_custom_call.1} parent=5 // pred_region
        %s345 = ssub.s32 %s16, 2
        // Predicated region
        $region49: #{tpu_custom_call.1} parent=47 // pred_check
          %p346 = pneg %p137
        $region50: #{tpu_custom_call.1} parent=47 // pred_check_branch
          %348 = sbr.rel (%p346) target = $region52
        $region51: #{tpu_custom_call.1} parent=47 // pred_region
          %s349 = sand.u32 %s122, 1
          %s350 = scalar_lea.sflag [#allocation4], %s349
          %s351 = sand.u32 %s122, 1
          %s352 = smul.addr %s351, 8
          %s353 = scalar_lea.vmem [#allocation7], %s352
          %354 = dma.done %s350, 128
        $region52: #{tpu_custom_call.1} parent=47 // pred_fallthru
          _
      $region48: #{tpu_custom_call.1} parent=5 // pred_fallthru
        _
    $region6: #{tpu_custom_call.1} parent=1 // loop_footer
      %s20 = sadd.s32 1, %s16
    $region7: #{tpu_custom_call.1} parent=1 // loop_footer_branch
      %15 = sbr.rel target = $region3
    $region8: #{tpu_custom_call.1} parent=1 // loop_exit
      _
    %355 = vsyncpa [#allocation3], 1
    %s356 = scalar_lea.sflag [#allocation3], 1
    %357 = vsyncpa %s356, 1
    %358 = vsyncpa [#allocation6], 1
    %359 = vsyncpa [#allocation4], 1
    %s360 = scalar_lea.sflag [#allocation4], 1
    %361 = vsyncpa %s360, 1

</llo_original>
